<compile_context>
chip_gen: v5e
topology: v5e:2x2
jax: 0.10.0
libtpu: 0.0.40
codegen_flags: <defaults>
</compile_context>

<pallas_src>
import jax
import jax.numpy as jnp
from jax.experimental import pallas as pl
from jax.experimental.pallas import tpu as pltpu


# ----------------------------------------------------------------------------
# Kernels
# ----------------------------------------------------------------------------
def _modulate_kernel(x_ref, w_ref, b_ref, o_ref):
    """No-K-tiling path: one (tm, tn) output tile per step, tk == K.

    x_ref: (tm, K)   w_ref: (tn, K)  (torch layout)   b_ref: (1, tn)
    """
    xf = x_ref[...].astype(jnp.float32)
    act = (xf * jax.nn.sigmoid(xf)).astype(x_ref.dtype)
    # NT matmul: contract the last dim of both operands (MXU-native).
    out = jax.lax.dot_general(
        act, w_ref[...],
        dimension_numbers=(((1,), (1,)), ((), ())),
        preferred_element_type=jnp.float32,
    )
    o_ref[...] = (out + b_ref[...].astype(jnp.float32)).astype(o_ref.dtype)


def _modulate_kernel_ktiled(x_ref, w_ref, b_ref, o_ref, acc_ref):
    """Fallback path: K is tiled, accumulate in f32 VMEM scratch."""
    @pl.when(pl.program_id(2) == 0)
    def _init():
        acc_ref[...] = jnp.zeros_like(acc_ref)

    xf = x_ref[...].astype(jnp.float32)
    act = (xf * jax.nn.sigmoid(xf)).astype(x_ref.dtype)
    acc_ref[...] += jax.lax.dot_general(
        act, w_ref[...],
        dimension_numbers=(((1,), (1,)), ((), ())),
        preferred_element_type=jnp.float32,
    )

    @pl.when(pl.program_id(2) == pl.num_programs(2) - 1)
    def _finalize():
        o_ref[...] = (acc_ref[...] + b_ref[...].astype(jnp.float32)).astype(o_ref.dtype)


# ----------------------------------------------------------------------------
# Tile selection
# ----------------------------------------------------------------------------
def _vmem_sizes():
    """Generation-aware (budget_for_tiles, compiler_vmem_limit) in bytes."""
    cap = None
    try:
        cap = getattr(pltpu.get_tpu_info(), "vmem_capacity_bytes", None)
    except Exception:
        cap = None
    if not cap:
        cap = 64 * 1024 * 1024  # conservative: v7x per-TC physical VMEM
    limit = int(cap * 0.80)     # headroom for compiler scratch
    budget = int(cap * 0.70)    # tile footprint budget (under the limit)
    return budget, limit


def _aligned_divisors(d, align=128):
    """Divisors of d that are multiples of `align`, descending; [d] if none."""
    cands = [v for v in range(align, d + 1, align) if d % v == 0]
    return sorted(cands, reverse=True) if cands else [d]


def _choose_tiles(M, K, N, x_is, w_is, b_is, o_is, budget):
    """Budget-driven tile sizing.  Returns (tm, tk, tn, use_k_tiling)."""
    sub = max(8, 32 // x_is)                 # dtype-aware sublane alignment
    m_cap = pl.cdiv(M, sub) * sub            # padded row count

    tn_cands = _aligned_divisors(N, 128)
    # Prefer >= 2 N blocks (pipelining + v7x megacore) when alignment allows.
    halfish = [t for t in tn_cands if t <= max(N // 2, 128)]
    if halfish:
        tn_cands = halfish

    # grid_m == 1 first (avoids re-streaming the whole weight), then descending.
    tm_cands = [m_cap] + [t for t in (4096, 2048, 1024, 512, 256, 128, 64, 32, 16, 8)
                          if t % sub == 0 and t < m_cap]

    def fits(tm, tk, tn, acc):
        use = 2 * (tm * tk * x_is + tn * tk * w_is + tn * b_is)   # double-buffered inputs
        use += 2 * tm * tn * o_is                                 # double-buffered output
        if acc:
            use += tm * tn * 4                                    # f32 accumulator
        return use <= budget

    # Preferred path: no K tiling.
    for tm in tm_cands:
        for tn in tn_cands:
            if fits(tm, K, tn, acc=False):
                return tm, K, tn, False

    # Fallback: tile K with an f32 accumulator.
    tk_cands = _aligned_divisors(K, 128)
    for tm in tm_cands:
        for tn in tn_cands:
            for tk in tk_cands:
                if fits(tm, tk, tn, acc=True):
                    return tm, tk, tn, True

    # Last resort: smallest tiles, let the compiler try.
    return tm_cands[-1], tk_cands[-1], tn_cands[-1], True


# ----------------------------------------------------------------------------
# Wrapper
# ----------------------------------------------------------------------------
def modulate_dit(x, weight, bias):
    """ModulateDiT forward: Linear(SiLU(x)).

    x:      [..., hidden]
    weight: [factor*hidden, hidden]   (torch nn.Linear layout, consumed as-is)
    bias:   [factor*hidden]
    """
    orig_shape = x.shape
    K = orig_shape[-1]
    N = weight.shape[0]
    assert weight.shape == (N, K)
    assert bias.shape == (N,)

    M = 1
    for s in orig_shape[:-1]:
        M *= s
    x2d = x.reshape(M, K)
    b2d = bias.reshape(1, N)
    out_dtype = x.dtype

    x_is = jnp.dtype(x2d.dtype).itemsize
    w_is = jnp.dtype(weight.dtype).itemsize
    b_is = jnp.dtype(bias.dtype).itemsize
    o_is = jnp.dtype(out_dtype).itemsize

    budget, vmem_limit = _vmem_sizes()
    tm, tk, tn, use_k_tiling = _choose_tiles(M, K, N, x_is, w_is, b_is, o_is, budget)

    # Pad rows to a multiple of tm; padded rows are sliced off afterwards.
    grid_m = pl.cdiv(M, tm)
    m_pad = grid_m * tm
    if m_pad != M:
        x2d = jnp.pad(x2d, ((0, m_pad - M), (0, 0)))
    assert N % tn == 0 and K % tk == 0

    cost = pl.CostEstimate(
        flops=2 * M * K * N,
        transcendentals=M * K,
        bytes_accessed=M * K * x_is + N * K * w_is + N * b_is + M * N * o_is,
    )

    if not use_k_tiling:
        grid = (grid_m, N // tn)
        grid_spec = pltpu.PrefetchScalarGridSpec(
            num_scalar_prefetch=0,
            grid=grid,
            in_specs=[
                pl.BlockSpec((tm, K), lambda i, j: (i, 0)),    # x stripe
                pl.BlockSpec((tn, K), lambda i, j: (j, 0)),    # weight [N, K] block (NT)
                pl.BlockSpec((1, tn), lambda i, j: (0, j)),    # bias tile
            ],
            out_specs=pl.BlockSpec((tm, tn), lambda i, j: (i, j)),
            scratch_shapes=[],
        )
        kernel = _modulate_kernel
        dim_sem = ("parallel", "parallel")
    else:
        grid = (grid_m, N // tn, K // tk)
        grid_spec = pltpu.PrefetchScalarGridSpec(
            num_scalar_prefetch=0,
            grid=grid,
            in_specs=[
                pl.BlockSpec((tm, tk), lambda i, j, k: (i, k)),
                pl.BlockSpec((tn, tk), lambda i, j, k: (j, k)),
                pl.BlockSpec((1, tn), lambda i, j, k: (0, j)),
            ],
            out_specs=pl.BlockSpec((tm, tn), lambda i, j, k: (i, j)),
            scratch_shapes=[pltpu.VMEM((tm, tn), jnp.float32)],
        )
        kernel = _modulate_kernel_ktiled
        dim_sem = ("parallel", "parallel", "arbitrary")

    out = pl.pallas_call(
        kernel,
        out_shape=jax.ShapeDtypeStruct((m_pad, N), out_dtype),
        grid_spec=grid_spec,
        compiler_params=pltpu.CompilerParams(
            dimension_semantics=dim_sem,
            vmem_limit_bytes=vmem_limit,
        ),
        cost_estimate=cost,
    )(x2d, weight, b2d)

    if m_pad != M:
        out = out[:M]
    return out.reshape(*orig_shape[:-1], N)


# ----------------------------------------------------------------------------
# Self-test
# ----------------------------------------------------------------------------
if __name__ == "__main__":
    key = jax.random.PRNGKey(0)
    kx, kw, kb = jax.random.split(key, 3)

    batch, seq, hidden, factor = 2, 8, 32, 6

    x = jax.random.normal(kx, (batch, seq, hidden), dtype=jnp.float32)
    # The torch module zero-initializes weight/bias (output would be all zeros);
    # use small deterministic random values so the matmul path is actually
    # exercised.  Forward semantics are identical.
    weight = 0.02 * jax.random.normal(kw, (factor * hidden, hidden), dtype=jnp.float32)
    bias = 0.02 * jax.random.normal(kb, (factor * hidden,), dtype=jnp.float32)

    out = modulate_dit(x, weight, bias)
    out = jax.block_until_ready(out)

    # Pure-JAX reference: Linear(SiLU(x)).
    act = x * jax.nn.sigmoid(x)
    ref = jnp.einsum("bsk,nk->bsn", act, weight,
                     precision=jax.lax.Precision.HIGHEST) + bias

    assert out.shape == (batch, seq, factor * hidden)
    assert out.dtype == x.dtype
    assert jnp.allclose(out, ref, atol=1e-3, rtol=1e-3)

    print("KERNEL_OK")
</pallas_src>

<mosaic_0001>
module attributes {stable_mosaic.version = 11 : i64} {
  func.func @_modulate_kernel(%arg0: i32, %arg1: i32, %arg2: memref<16x32xf32, #tpu.memory_space<vmem>>, %arg3: memref<192x32xf32, #tpu.memory_space<vmem>>, %arg4: memref<1x192xf32, #tpu.memory_space<vmem>>, %arg5: memref<16x192xf32, #tpu.memory_space<vmem>>) attributes {dimension_semantics = [#tpu.dimension_semantics<parallel>, #tpu.dimension_semantics<parallel>], iteration_bounds = array<i64: 1, 1>, scalar_prefetch = 0 : i64, scratch_operands = 0 : i64, tpu.core_type = #tpu.core_type<tc>, window_params = [{transform_indices = @transform_0, window_bounds = array<i64: 16, 32>}, {transform_indices = @transform_1, window_bounds = array<i64: 192, 32>}, {transform_indices = @transform_2, window_bounds = array<i64: 1, 192>}, {transform_indices = @transform_3, window_bounds = array<i64: 16, 192>}]} {
    %c0 = arith.constant 0 : index
    %c0_0 = arith.constant 0 : index
    %0 = vector.load %arg2[%c0, %c0_0] : memref<16x32xf32, #tpu.memory_space<vmem>>, vector<16x32xf32>
    %1 = arith.negf %0 : vector<16x32xf32>
    %2 = math.exp %1 : vector<16x32xf32>
    %cst = arith.constant 1.000000e+00 : f32
    %3 = vector.broadcast %cst : f32 to vector<16x32xf32>
    %4 = arith.addf %3, %2 : vector<16x32xf32>
    %5 = arith.divf %3, %4 : vector<16x32xf32>
    %6 = arith.mulf %0, %5 : vector<16x32xf32>
    %c0_1 = arith.constant 0 : index
    %c0_2 = arith.constant 0 : index
    %7 = vector.load %arg3[%c0_1, %c0_2] : memref<192x32xf32, #tpu.memory_space<vmem>>, vector<192x32xf32>
    %cst_3 = arith.constant dense<0.000000e+00> : vector<16x192xf32>
    %8 = tpu.matmul %6, %7, %cst_3 {dimension_numbers = #tpu.dot_dimension_numbers<[1], [1], [0], [0], [0, 0, 1, 0], [], []>} : vector<16x32xf32>, vector<192x32xf32>, vector<16x192xf32> -> vector<16x192xf32>
    %c0_4 = arith.constant 0 : index
    %c0_5 = arith.constant 0 : index
    %9 = vector.load %arg4[%c0_4, %c0_5] : memref<1x192xf32, #tpu.memory_space<vmem>>, vector<1x192xf32>
    %10 = vector.broadcast %9 : vector<1x192xf32> to vector<16x192xf32>
    %11 = arith.addf %8, %10 : vector<16x192xf32>
    %c0_6 = arith.constant 0 : index
    %c0_7 = arith.constant 0 : index
    %12 = vector.load %arg5[%c0_6, %c0_7] : memref<16x192xf32, #tpu.memory_space<vmem>>, vector<16x192xf32>
    tpu.vector_store %arg5[%c0_6, %c0_7], %11 {strides = array<i32>} : memref<16x192xf32, #tpu.memory_space<vmem>>, vector<16x192xf32>,
    return
  }
  func.func @transform_0(%arg0: i32, %arg1: i32) -> (i32, i32) {
    %c0_i32 = arith.constant 0 : i32
    %c0_i32_0 = arith.constant 0 : i32
    return %arg0, %c0_i32 : i32, i32
  }
  func.func @transform_1(%arg0: i32, %arg1: i32) -> (i32, i32) {
    %c0_i32 = arith.constant 0 : i32
    %c0_i32_0 = arith.constant 0 : i32
    return %arg1, %c0_i32 : i32, i32
  }
  func.func @transform_2(%arg0: i32, %arg1: i32) -> (i32, i32) {
    %c0_i32 = arith.constant 0 : i32
    %c0_i32_0 = arith.constant 0 : i32
    return %c0_i32, %arg1 : i32, i32
  }
  func.func @transform_3(%arg0: i32, %arg1: i32) -> (i32, i32) {
    %c0_i32 = arith.constant 0 : i32
    return %arg0, %arg1 : i32, i32
  }
}

</mosaic_0001>

<llo_original>
// kernel: tpu_custom_call.1
$region0: #{tpu_custom_call.1}
  #allocation0 [shape = 'u32[]', space=smem, size = 0x4, offset = 0x4, fixed_abs, tag = 'smem constant byte address 0x4 - core index']
  #allocation1 [shape = 'u32[72,128]{1,0:T(1,128)}', space=vmem, size = 0x9000, scoped, tag = 'internal scratch']
  %s0 = inlined_call_operand.vmem [shape: f32[16,32], index: 0, kind: input, shape index: {}]
  %s1 = inlined_call_operand.vmem [shape: f32[192,32], index: 1, kind: input, shape index: {}]
  %s2 = inlined_call_operand.vmem [shape: f32[1,192], index: 2, kind: input, shape index: {}]
  %s3 = inlined_call_operand.hbm [shape: f32[16,192], index: 3, kind: output, shape index: {}]
  %s4 = sld [smem:[#allocation0]]
  $region22: #{tpu_custom_call.1} parent=0
    _
  %s6 = ssub.s32 1, %s4
  %s7 = scalar_select 0, %s6, %s4
  $region1: #{tpu_custom_call.1} parent=0
    #allocation2 [shape = 'u8[16384]{0}', space=vmem, size = 0x4000, scoped, tag = 'output window, operand 0, single buffered']
    #allocation3 [shape = 's32[1]{0}', space=sflag, size = 0x4, scoped, tag = 'scoped memory for tpu_custom_call.1']
    %8 = vsyncpa [#allocation3], 0
    // Predicated region
    $region2: #{tpu_custom_call.1} parent=1 // pred_check
      _
    $region3: #{tpu_custom_call.1} parent=1 // pred_check_branch
      %10 = sbr.rel (0) target = $region5
    $region4: #{tpu_custom_call.1} parent=1 // pred_region
      _
    $region5: #{tpu_custom_call.1} parent=1 // pred_fallthru
      _
    // Predicated region
    $region6: #{tpu_custom_call.1} parent=1 // pred_check
      _
    $region7: #{tpu_custom_call.1} parent=1 // pred_check_branch
      %12 = sbr.rel (0) target = $region9
    $region8: #{tpu_custom_call.1} parent=1 // pred_region
      _
    $region9: #{tpu_custom_call.1} parent=1 // pred_fallthru
      _
    // Predicated region
    $region10: #{tpu_custom_call.1} parent=1 // pred_check
      _
    $region11: #{tpu_custom_call.1} parent=1 // pred_check_branch
      %14 = sbr.rel (0) target = $region13
    $region12: #{tpu_custom_call.1} parent=1 // pred_region
      _
    $region13: #{tpu_custom_call.1} parent=1 // pred_fallthru
      _
    %v15 = vld [vmem:[%s0] sm:$0xff]
    %v16 = vld [vmem:[%s0 + $0x8] sm:$0xff]
    %v17 = vxor.u32 %v15, 2147483648
    %v18 = vxor.u32 %v16, 2147483648
    %v19 = vmul.f32 %v17, 1.442695
    %v20 = vpow.pop %v19
    %v21 = vmul.f32 %v18, 1.442695
    %v22 = vpow.pop %v21
    %v23 = vadd.f32 %v20, 1.0
    %v24 = vadd.f32 %v22, 1.0
    %v25 = vrcp.pop %v23
    %v26 = vmul.f32 %v23, %v25
    %v27 = vsub.f32 1.0, %v26
    %v28 = vmul.f32 %v25, %v27
    %v29 = vadd.f32 %v25, %v28
    %vm30 = vweird.f32 %v23
    %vm31 = vweird.f32 %v25
    %vm32 = vmor %vm30, %vm31
    %v33 = vsel %vm32, %v25, %v29
    %v34 = vand.u32 2147483647, %v23
    %vm35 = vcmp.eq.f32.partialorder %v34, 8.507059e+37
    %v36 = vand.u32 %v23, 2147483648
    %v37 = vor.u32 1.1754944e-38, %v36
    %v38 = vsel %vm35, %v37, %v33
    %v39 = vmul.f32 1.0, %v38
    %v40 = vrcp.pop %v24
    %v41 = vmul.f32 %v24, %v40
    %v42 = vsub.f32 1.0, %v41
    %v43 = vmul.f32 %v40, %v42
    %v44 = vadd.f32 %v40, %v43
    %vm45 = vweird.f32 %v24
    %vm46 = vweird.f32 %v40
    %vm47 = vmor %vm45, %vm46
    %v48 = vsel %vm47, %v40, %v44
    %v49 = vand.u32 2147483647, %v24
    %vm50 = vcmp.eq.f32.partialorder %v49, 8.507059e+37
    %v51 = vand.u32 %v24, 2147483648
    %v52 = vor.u32 1.1754944e-38, %v51
    %v53 = vsel %vm50, %v52, %v48
    %v54 = vmul.f32 1.0, %v53
    %v55 = vmul.f32 %v15, %v39
    %v56 = vmul.f32 %v16, %v54
    %v57 = vld [vmem:[%s1] sm:$0xff]
    %v58 = vld [vmem:[%s1 + $0x8] sm:$0xff]
    %v59 = vld [vmem:[%s1 + $0x10] sm:$0xff]
    %v60 = vld [vmem:[%s1 + $0x18] sm:$0xff]
    %v61 = vld [vmem:[%s1 + $0x20] sm:$0xff]
    %v62 = vld [vmem:[%s1 + $0x28] sm:$0xff]
    %v63 = vld [vmem:[%s1 + $0x30] sm:$0xff]
    %v64 = vld [vmem:[%s1 + $0x38] sm:$0xff]
    %v65 = vld [vmem:[%s1 + $0x40] sm:$0xff]
    %v66 = vld [vmem:[%s1 + $0x48] sm:$0xff]
    %v67 = vld [vmem:[%s1 + $0x50] sm:$0xff]
    %v68 = vld [vmem:[%s1 + $0x58] sm:$0xff]
    %v69 = vld [vmem:[%s1 + $0x60] sm:$0xff]
    %v70 = vld [vmem:[%s1 + $0x68] sm:$0xff]
    %v71 = vld [vmem:[%s1 + $0x70] sm:$0xff]
    %v72 = vld [vmem:[%s1 + $0x78] sm:$0xff]
    %v73 = vld [vmem:[%s1 + $0x80] sm:$0xff]
    %v74 = vld [vmem:[%s1 + $0x88] sm:$0xff]
    %v75 = vld [vmem:[%s1 + $0x90] sm:$0xff]
    %v76 = vld [vmem:[%s1 + $0x98] sm:$0xff]
    %v77 = vld [vmem:[%s1 + $0xa0] sm:$0xff]
    %v78 = vld [vmem:[%s1 + $0xa8] sm:$0xff]
    %v79 = vld [vmem:[%s1 + $0xb0] sm:$0xff]
    %v80 = vld [vmem:[%s1 + $0xb8] sm:$0xff]
    %v81 = vld [vmem:[%s2] sm:$0x3]
    %v83 = vperm.slane %v81, 0
    %v84 = vperm.slane %v81, 1
    %vm87 = vcmask 261120
    %v89 = vsel %vm87, %v55, 0
    %v92 = vsel %vm87, %v56, 0
    %v95 = vsel %vm87, %v57, 0
    %v98 = vsel %vm87, %v58, 0
    %v101 = vsel %vm87, %v59, 0
    %v104 = vsel %vm87, %v60, 0
    %v107 = vsel %vm87, %v61, 0
    %v110 = vsel %vm87, %v62, 0
    %v113 = vsel %vm87, %v63, 0
    %v116 = vsel %vm87, %v64, 0
    %v119 = vsel %vm87, %v65, 0
    %v122 = vsel %vm87, %v66, 0
    %v125 = vsel %vm87, %v67, 0
    %v128 = vsel %vm87, %v68, 0
    %v131 = vsel %vm87, %v69, 0
    %v134 = vsel %vm87, %v70, 0
    %v137 = vsel %vm87, %v71, 0
    %v140 = vsel %vm87, %v72, 0
    %v143 = vsel %vm87, %v73, 0
    %v146 = vsel %vm87, %v74, 0
    %v149 = vsel %vm87, %v75, 0
    %v152 = vsel %vm87, %v76, 0
    %v155 = vsel %vm87, %v77, 0
    %v158 = vsel %vm87, %v78, 0
    %v161 = vsel %vm87, %v79, 0
    %v164 = vsel %vm87, %v80, 0
    %166 = vmatpush.xpose.msra.mxu0 %v140
    %167 = vmatpush.xpose.msra.mxu0 %v137
    %168 = vmatpush.xpose.msra.mxu0 %v134
    %169 = vmatpush.xpose.msra.mxu0 %v131
    %170 = vmatpush.xpose.msra.mxu0 %v128
    %171 = vmatpush.xpose.msra.mxu0 %v125
    %172 = vmatpush.xpose.msra.mxu0 %v122
    %173 = vmatpush.xpose.msra.mxu0 %v119
    %174 = vmatpush.xpose.msra.mxu0 %v116
    %175 = vmatpush.xpose.msra.mxu0 %v113
    %176 = vmatpush.xpose.msra.mxu0 %v110
    %177 = vmatpush.xpose.msra.mxu0 %v107
    %178 = vmatpush.xpose.msra.mxu0 %v104
    %179 = vmatpush.xpose.msra.mxu0 %v101
    %180 = vmatpush.xpose.msra.mxu0 %v98
    %181 = vmatpush.xpose.msra.mxu0 %v95
    %182 = vmatmul.f32.gmra.mxu0 %v89
    %v183 = vpop.f32.mrf.mxu0
    %v184 = vadd.f32 %v83, %v183
    %185 = vmatmul.f32.gmra.mxu0 %v92
    %v186 = vpop.f32.mrf.mxu0
    %v187 = vadd.f32 %v83, %v186
    %188 = vdwg.mxu0
    %189 = vmatpush.xpose.msra.mxu0 0.0
    %190 = vmatpush.xpose.msra.mxu0 0.0
    %191 = vmatpush.xpose.msra.mxu0 0.0
    %192 = vmatpush.xpose.msra.mxu0 0.0
    %193 = vmatpush.xpose.msra.mxu0 0.0
    %194 = vmatpush.xpose.msra.mxu0 0.0
    %195 = vmatpush.xpose.msra.mxu0 0.0
    %196 = vmatpush.xpose.msra.mxu0 0.0
    %197 = vmatpush.xpose.msra.mxu0 %v164
    %198 = vmatpush.xpose.msra.mxu0 %v161
    %199 = vmatpush.xpose.msra.mxu0 %v158
    %200 = vmatpush.xpose.msra.mxu0 %v155
    %201 = vmatpush.xpose.msra.mxu0 %v152
    %202 = vmatpush.xpose.msra.mxu0 %v149
    %203 = vmatpush.xpose.msra.mxu0 %v146
    %204 = vmatpush.xpose.msra.mxu0 %v143
    %205 = vmatmul.f32.gmra.mxu0 %v89
    %v206 = vpop.f32.mrf.mxu0
    %v207 = vadd.f32 %v84, %v206
    %208 = vmatmul.f32.gmra.mxu0 %v92
    %v209 = vpop.f32.mrf.mxu0
    %v210 = vadd.f32 %v84, %v209
    %211 = vdwg.mxu0
    %212 = vst [vmem:[#allocation2] sm:$0xff] %v184
    %vm213 = vcmask 523264
    %214 = vst.msk [vmem:[#allocation2 + $0x8] sm:$0xff] %vm213, %v207
    %215 = vst [vmem:[#allocation2 + $0x10] sm:$0xff] %v187
    %216 = vst.msk [vmem:[#allocation2 + $0x18] sm:$0xff] %vm213, %v210
    // Predicated region
    $region14: #{tpu_custom_call.1} parent=1 // pred_check
      _
    $region15: #{tpu_custom_call.1} parent=1 // pred_check_branch
      %218 = sbr.rel (0) target = $region17
    $region16: #{tpu_custom_call.1} parent=1 // pred_region
      %220 = vsyncadd [#allocation3], 0
      %s221 = sshll.u32 [#allocation2], 4
      %s222 = int_to_ptr.vmem [resolvable:$true] %s221
      %s223 = sshll.u32 %s3, 4
      %s224 = int_to_ptr.hbm [resolvable:$true] %s223
      %229 = dma.vmem_to_hbm [thread:$0]  %s222, 512, %s224, [#allocation3], 256, 256, 16
    $region17: #{tpu_custom_call.1} parent=1 // pred_fallthru
      _
    // Predicated region
    $region18: #{tpu_custom_call.1} parent=1 // pred_check
      _
    $region19: #{tpu_custom_call.1} parent=1 // pred_check_branch
      %231 = sbr.rel (0) target = $region21
    $region20: #{tpu_custom_call.1} parent=1 // pred_region
      %233 = dma.done [#allocation3], 512
    $region21: #{tpu_custom_call.1} parent=1 // pred_fallthru
      _
    %234 = vsyncpa [#allocation3], 1

</llo_original>
